<compile_context>
chip_gen: v5e
topology: v5e:2x2
jax: 0.10.0
libtpu: 0.0.40
codegen_flags: <defaults>
</compile_context>

<pallas_src>
import numpy as np
import jax
import jax.numpy as jnp
from jax import lax
from jax.experimental import pallas as pl
from jax.experimental.pallas import tpu as pltpu

# ---------------- configuration (small, consistent) ----------------
IN_CHANNELS = 3
MAX_OUT_CHANNELS = 16
NUM_MASKS = 3
TARGET_H = 8
TARGET_W = 8
KERNEL_SIZES = [3, 5]            # from conv_kernel_configs[i][0]
SUBSAMPLING_FACTORS = [1, 2]     # TODO(synk): {4,8} are shape-inconsistent here
INPUT_H = 10
INPUT_W = 10

K_RAW = INPUT_H * INPUT_W * IN_CHANNELS            # 300  (ih, iw, ci) row-major
K_PAD = ((K_RAW + 1 + 127) // 128) * 128           # 384  (+1 bias ones-column)
N_OUT = TARGET_H * TARGET_W * MAX_OUT_CHANNELS     # 1024 (th, tw, co) row-major


def _round_up(a, b):
    return ((a + b - 1) // b) * b


# ---------------- fused Pallas kernel: one GEMM per batch tile ----------------

def _fused_block_kernel(x_ref, w_ref, o_ref):
    """x_ref: (B, K_PAD) bf16; w_ref: (K_PAD, N_OUT) bf16; o_ref: (B, N_OUT) f32."""
    o_ref[...] = jnp.dot(x_ref[...], w_ref[...],
                         preferred_element_type=jnp.float32)


# ---------------- wrapper-side geometry / weight folding ----------------

def _axis_geometry(full, s, k, target):
    """Per-axis geometry for one (subsample s, kernel k) pair.

    Returns (G, kept, f) where G[tap, full_res_pos, target_pos] carries the
    avg-pool (1/s), the VALID conv tap shift, and the smart_padding
    interleave/crop; kept[target_pos] marks positions actually written
    (bias lands only there); f is the interleave factor.
    """
    pooled = full // s
    out = pooled - k + 1
    assert 1 <= out <= target, (full, s, k, target)
    f = 1 if out >= target else (target + out - 1) // out
    G = np.zeros((k, full, target), np.float32)
    kept = np.zeros((target,), np.float32)
    for tap in range(k):
        for o in range(out):
            t = o * f
            if t >= target:
                continue
            kept[t] = 1.0
            p = o + tap                       # pooled row feeding this output
            for d in range(s):
                G[tap, s * p + d, t] += 1.0 / s
    return G, kept, f


def _build_folded_gemm(p):
    """Fold ChannelMask, softmax branch/kernel weights, pooling, convs, bias
    and smart_padding into a single (K_PAD, N_OUT) GEMM weight (bf16)."""
    weights = jax.nn.softmax(p["alpha"])
    binary_masks = jnp.clip(jnp.round(p["masks"]), 0.0, 1.0)
    combined_mask = jnp.sum(weights[:, None] * binary_masks, axis=0)  # (Cmax,)
    conv_w = jax.nn.softmax(p["conv_kernel_weights"])
    res_w = jax.nn.softmax(p["res_weights"])

    mat = jnp.zeros((K_RAW, N_OUT), jnp.float32)
    bias_row = jnp.zeros((N_OUT,), jnp.float32)
    for f_idx, s in enumerate(SUBSAMPLING_FACTORS):
        for ki, k in enumerate(KERNEL_SIZES):
            Gh, kept_h, fh = _axis_geometry(INPUT_H, s, k, TARGET_H)
            Gw, kept_w, fw = _axis_geometry(INPUT_W, s, k, TARGET_W)
            assert fh == fw  # mirrors the smart_padding assert
            scale = res_w[f_idx] * conv_w[ki]
            # Only the real input channels matter (padded channels are zero),
            # so restrict ci to IN_CHANNELS and fold the channel mask in.
            w_eff = (p["conv_weights"][ki][:, :, :IN_CHANNELS, :]
                     * combined_mask[:IN_CHANNELS][None, None, :, None]
                     * scale)                                   # (k,k,Ci,Co)
            m = jnp.einsum("aht,bwu,abio->hwituo",
                           jnp.asarray(Gh), jnp.asarray(Gw), w_eff,
                           precision=lax.Precision.HIGHEST)
            mat = mat + m.reshape(K_RAW, N_OUT)
            kept = jnp.asarray(np.outer(kept_h, kept_w))        # (TH, TW)
            bias_row = bias_row + (kept[:, :, None]
                                   * (scale * p["conv_biases"][ki])[None, None, :]
                                   ).reshape(N_OUT)

    w_full = jnp.concatenate(
        [mat, bias_row[None, :],
         jnp.zeros((K_PAD - K_RAW - 1, N_OUT), jnp.float32)], axis=0)
    return w_full.astype(jnp.bfloat16)


# ---------------- full forward ----------------

@jax.jit
def fbnetv2_basic_search_block_forward(x_nchw, p):
    n = x_nchw.shape[0]
    w_full = _build_folded_gemm(p)                     # (K_PAD, N_OUT) bf16

    # NCHW -> NHWC (real channels only), flatten, append bias ones-column,
    # pad K to a lane-friendly multiple of 128.
    x = jnp.transpose(x_nchw, (0, 2, 3, 1)).astype(jnp.float32)
    x_flat = jnp.concatenate(
        [x.reshape(n, K_RAW),
         jnp.ones((n, 1), jnp.float32),
         jnp.zeros((n, K_PAD - K_RAW - 1), jnp.float32)], axis=1)

    # Batch-block the grid (MXU M dimension = batch tile); pad n to the tile.
    n_pad8 = _round_up(n, 8)
    b_tile = min(128, n_pad8)
    n_pad = _round_up(n_pad8, b_tile)
    x_flat = jnp.pad(x_flat, ((0, n_pad - n), (0, 0))).astype(jnp.bfloat16)

    out = pl.pallas_call(
        _fused_block_kernel,
        out_shape=jax.ShapeDtypeStruct((n_pad, N_OUT), jnp.float32),
        grid=(n_pad // b_tile,),
        in_specs=[
            pl.BlockSpec((b_tile, K_PAD), lambda b: (b, 0)),
            pl.BlockSpec((K_PAD, N_OUT), lambda b: (0, 0)),  # constant -> DMA'd once
        ],
        out_specs=pl.BlockSpec((b_tile, N_OUT), lambda b: (b, 0)),
        compiler_params=pltpu.CompilerParams(
            dimension_semantics=("parallel",)),
    )(x_flat, w_full)

    out = out[:n].reshape(n, TARGET_H, TARGET_W, MAX_OUT_CHANNELS)
    return jnp.transpose(out, (0, 3, 1, 2))            # NHWC -> NCHW


# ---------------- pure-JAX reference (verification only) ----------------

def _reference_forward(x_nchw, p):
    x = jnp.transpose(x_nchw, (0, 2, 3, 1)).astype(jnp.float32)
    weights = jax.nn.softmax(p["alpha"])
    binary_masks = jnp.clip(jnp.round(p["masks"]), 0.0, 1.0)
    combined_mask = jnp.sum(weights[:, None] * binary_masks, axis=0)
    x = jnp.pad(x, ((0, 0), (0, 0), (0, 0),
                    (0, MAX_OUT_CHANNELS - x.shape[-1])))
    x = x * combined_mask[None, None, None, :]
    conv_w = jax.nn.softmax(p["conv_kernel_weights"])
    res_w = jax.nn.softmax(p["res_weights"])

    branch_outs = []
    for s in SUBSAMPLING_FACTORS:
        if s > 1:
            nb, hh, ww, cc = x.shape
            xr = x.reshape(nb, hh // s, s, ww // s, s, cc).mean(axis=(2, 4))
        else:
            xr = x
        br = 0.0
        for ki in range(len(KERNEL_SIZES)):
            y = lax.conv_general_dilated(
                xr, p["conv_weights"][ki], (1, 1), "VALID",
                dimension_numbers=("NHWC", "HWIO", "NHWC"),
                precision=lax.Precision.HIGHEST)
            y = y + p["conv_biases"][ki][None, None, None, :]
            nb, hh, ww, cc = y.shape
            if hh < TARGET_H or ww < TARGET_W:
                fh = (TARGET_H + hh - 1) // hh
                fw = (TARGET_W + ww - 1) // ww
                yp = jnp.zeros((nb, fh * hh, fw * ww, cc), y.dtype)
                yp = yp.at[:, ::fh, ::fw, :].set(y)
                y = yp[:, :TARGET_H, :TARGET_W, :]
            br = br + conv_w[ki] * y
        branch_outs.append(br)
    out = sum(res_w[i] * branch_outs[i] for i in range(len(branch_outs)))
    return jnp.transpose(out, (0, 3, 1, 2))


# ---------------- deterministic parameter init ----------------

def init_params(key):
    ks = jax.random.split(key, 1 + 2 * len(KERNEL_SIZES))
    params = {
        "alpha": jnp.zeros((NUM_MASKS,), jnp.float32),
        "masks": jax.random.uniform(ks[0], (NUM_MASKS, MAX_OUT_CHANNELS),
                                    jnp.float32),
        "res_weights": jnp.zeros((len(SUBSAMPLING_FACTORS),), jnp.float32),
        "conv_kernel_weights": jnp.zeros((len(KERNEL_SIZES),), jnp.float32),
        "conv_weights": [],
        "conv_biases": [],
    }
    for i, k in enumerate(KERNEL_SIZES):
        fan_in = MAX_OUT_CHANNELS * k * k
        bound = 1.0 / (fan_in ** 0.5)
        w = jax.random.uniform(ks[1 + 2 * i],
                               (k, k, MAX_OUT_CHANNELS, MAX_OUT_CHANNELS),
                               jnp.float32, -bound, bound)
        b = jax.random.uniform(ks[2 + 2 * i], (MAX_OUT_CHANNELS,),
                               jnp.float32, -bound, bound)
        params["conv_weights"].append(w)
        params["conv_biases"].append(b)
    return params


if __name__ == "__main__":
    key = jax.random.PRNGKey(0)
    pkey, xkey = jax.random.split(key)
    params = init_params(pkey)

    # Input in NCHW, like the PyTorch module would receive.
    x = jax.random.normal(xkey, (2, IN_CHANNELS, INPUT_H, INPUT_W), jnp.float32)

    out = fbnetv2_basic_search_block_forward(x, params)
    out = jax.block_until_ready(out)
    assert out.shape == (2, MAX_OUT_CHANNELS, TARGET_H, TARGET_W), out.shape
    assert bool(jnp.all(jnp.isfinite(out)))

    ref = _reference_forward(x, params)
    err = float(jnp.max(jnp.abs(out - ref)))
    # bf16 GEMM operands with f32 accumulation: expected error ~1e-3 here.
    assert err < 2e-2, f"kernel/reference mismatch: max abs err = {err}"
    print("KERNEL_OK")
</pallas_src>

<mosaic_0001>
module attributes {stable_mosaic.version = 11 : i64} {
  func.func @_fused_block_kernel(%arg0: i32, %arg1: memref<8x384xbf16, #tpu.memory_space<vmem>>, %arg2: memref<384x1024xbf16, #tpu.memory_space<vmem>>, %arg3: memref<8x1024xf32, #tpu.memory_space<vmem>>) attributes {dimension_semantics = [#tpu.dimension_semantics<parallel>], iteration_bounds = array<i64: 1>, scalar_prefetch = 0 : i64, scratch_operands = 0 : i64, tpu.core_type = #tpu.core_type<tc>, window_params = [{transform_indices = @transform_0, window_bounds = array<i64: 8, 384>}, {pipeline_mode = #tpu.pipeline_mode<synchronous>, transform_indices = @transform_1, window_bounds = array<i64: 384, 1024>}, {transform_indices = @transform_2, window_bounds = array<i64: 8, 1024>}]} {
    %c0 = arith.constant 0 : index
    %c0_0 = arith.constant 0 : index
    %0 = vector.load %arg1[%c0, %c0_0] : memref<8x384xbf16, #tpu.memory_space<vmem>>, vector<8x384xbf16>
    %c0_1 = arith.constant 0 : index
    %c0_2 = arith.constant 0 : index
    %1 = vector.load %arg2[%c0_1, %c0_2] : memref<384x1024xbf16, #tpu.memory_space<vmem>>, vector<384x1024xbf16>
    %cst = arith.constant dense<0.000000e+00> : vector<8x1024xf32>
    %2 = tpu.matmul %0, %1, %cst {dimension_numbers = #tpu.dot_dimension_numbers<[1], [0], [0], [1], [0, 0, 1, 1], [], []>} : vector<8x384xbf16>, vector<384x1024xbf16>, vector<8x1024xf32> -> vector<8x1024xf32>
    %c0_3 = arith.constant 0 : index
    %c0_4 = arith.constant 0 : index
    %3 = vector.load %arg3[%c0_3, %c0_4] : memref<8x1024xf32, #tpu.memory_space<vmem>>, vector<8x1024xf32>
    tpu.vector_store %arg3[%c0_3, %c0_4], %2 {strides = array<i32>} : memref<8x1024xf32, #tpu.memory_space<vmem>>, vector<8x1024xf32>,
    return
  }
  func.func @transform_0(%arg0: i32) -> (i32, i32) {
    %c0_i32 = arith.constant 0 : i32
    %c0_i32_0 = arith.constant 0 : i32
    return %arg0, %c0_i32 : i32, i32
  }
  func.func @transform_1(%arg0: i32) -> (i32, i32) {
    %c0_i32 = arith.constant 0 : i32
    %c0_i32_0 = arith.constant 0 : i32
    %c0_i32_1 = arith.constant 0 : i32
    return %c0_i32, %c0_i32_0 : i32, i32
  }
  func.func @transform_2(%arg0: i32) -> (i32, i32) {
    %c0_i32 = arith.constant 0 : i32
    %c0_i32_0 = arith.constant 0 : i32
    return %arg0, %c0_i32 : i32, i32
  }
}

</mosaic_0001>

<llo_original>
// kernel: fbnetv2_basic_search_block_forward.1
$region0: #{fbnetv2_basic_search_block_forward.1}
  #allocation0 [shape = 'u32[]', space=smem, size = 0x4, offset = 0x4, fixed_abs, tag = 'smem constant byte address 0x4 - core index']
  #allocation1 [shape = 'u32[72,128]{1,0:T(1,128)}', space=vmem, size = 0x9000, scoped, tag = 'internal scratch']
  %s0 = inlined_call_operand.vmem [shape: bf16[8,384], index: 0, kind: input, shape index: {}]
  %s1 = inlined_call_operand.vmem [shape: bf16[384,1024], index: 1, kind: input, shape index: {}]
  %s2 = inlined_call_operand.vmem [shape: f32[8,1024], index: 2, kind: output, shape index: {}]
  %s3 = sld [smem:[#allocation0]]
  $region18: #{fbnetv2_basic_search_block_forward.1} parent=0
    _
  %s5 = ssub.s32 1, %s3
  %s6 = scalar_select 0, %s5, %s3
  // Predicated region
  $region2: #{fbnetv2_basic_search_block_forward.1} parent=0 // pred_check
    _
  $region3: #{fbnetv2_basic_search_block_forward.1} parent=0 // pred_check_branch
    %8 = sbr.rel (0) target = $region5
  $region4: #{fbnetv2_basic_search_block_forward.1} parent=0 // pred_region
    _
  $region5: #{fbnetv2_basic_search_block_forward.1} parent=0 // pred_fallthru
    _
  // Predicated region
  $region6: #{fbnetv2_basic_search_block_forward.1} parent=0 // pred_check
    _
  $region7: #{fbnetv2_basic_search_block_forward.1} parent=0 // pred_check_branch
    %10 = sbr.rel (0) target = $region9
  $region8: #{fbnetv2_basic_search_block_forward.1} parent=0 // pred_region
    _
  $region9: #{fbnetv2_basic_search_block_forward.1} parent=0 // pred_fallthru
    _
  %v11 = vld [vmem:[%s0] sm:$0xff]
  %v12 = vld [vmem:[%s0 + $0x8] sm:$0xf]
  %v13 = vld [vmem:[%s1] sm:$0xff]
  %v14 = vld [vmem:[%s1 + $0x8] sm:$0xff]
  %v15 = vld [vmem:[%s1 + $0x10] sm:$0xff]
  %v16 = vld [vmem:[%s1 + $0x18] sm:$0xff]
  %v17 = vld [vmem:[%s1 + $0x20] sm:$0xff]
  %v18 = vld [vmem:[%s1 + $0x28] sm:$0xff]
  %v19 = vld [vmem:[%s1 + $0x30] sm:$0xff]
  %v20 = vld [vmem:[%s1 + $0x38] sm:$0xff]
  %v21 = vld [vmem:[%s1 + $0x40] sm:$0xff]
  %v22 = vld [vmem:[%s1 + $0x48] sm:$0xff]
  %v23 = vld [vmem:[%s1 + $0x50] sm:$0xff]
  %v24 = vld [vmem:[%s1 + $0x58] sm:$0xff]
  %v25 = vld [vmem:[%s1 + $0x60] sm:$0xff]
  %v26 = vld [vmem:[%s1 + $0x68] sm:$0xff]
  %v27 = vld [vmem:[%s1 + $0x70] sm:$0xff]
  %v28 = vld [vmem:[%s1 + $0x78] sm:$0xff]
  %v29 = vld [vmem:[%s1 + $0x80] sm:$0xff]
  %v30 = vld [vmem:[%s1 + $0x88] sm:$0xff]
  %v31 = vld [vmem:[%s1 + $0x90] sm:$0xff]
  %v32 = vld [vmem:[%s1 + $0x98] sm:$0xff]
  %v33 = vld [vmem:[%s1 + $0xa0] sm:$0xff]
  %v34 = vld [vmem:[%s1 + $0xa8] sm:$0xff]
  %v35 = vld [vmem:[%s1 + $0xb0] sm:$0xff]
  %v36 = vld [vmem:[%s1 + $0xb8] sm:$0xff]
  %v37 = vld [vmem:[%s1 + $0xc0] sm:$0xff]
  %v38 = vld [vmem:[%s1 + $0xc8] sm:$0xff]
  %v39 = vld [vmem:[%s1 + $0xd0] sm:$0xff]
  %v40 = vld [vmem:[%s1 + $0xd8] sm:$0xff]
  %v41 = vld [vmem:[%s1 + $0xe0] sm:$0xff]
  %v42 = vld [vmem:[%s1 + $0xe8] sm:$0xff]
  %v43 = vld [vmem:[%s1 + $0xf0] sm:$0xff]
  %v44 = vld [vmem:[%s1 + $0xf8] sm:$0xff]
  %v45 = vld [vmem:[%s1 + $0x100] sm:$0xff]
  %v46 = vld [vmem:[%s1 + $0x108] sm:$0xff]
  %v47 = vld [vmem:[%s1 + $0x110] sm:$0xff]
  %v48 = vld [vmem:[%s1 + $0x118] sm:$0xff]
  %v49 = vld [vmem:[%s1 + $0x120] sm:$0xff]
  %v50 = vld [vmem:[%s1 + $0x128] sm:$0xff]
  %v51 = vld [vmem:[%s1 + $0x130] sm:$0xff]
  %v52 = vld [vmem:[%s1 + $0x138] sm:$0xff]
  %v53 = vld [vmem:[%s1 + $0x140] sm:$0xff]
  %v54 = vld [vmem:[%s1 + $0x148] sm:$0xff]
  %v55 = vld [vmem:[%s1 + $0x150] sm:$0xff]
  %v56 = vld [vmem:[%s1 + $0x158] sm:$0xff]
  %v57 = vld [vmem:[%s1 + $0x160] sm:$0xff]
  %v58 = vld [vmem:[%s1 + $0x168] sm:$0xff]
  %v59 = vld [vmem:[%s1 + $0x170] sm:$0xff]
  %v60 = vld [vmem:[%s1 + $0x178] sm:$0xff]
  %v61 = vld [vmem:[%s1 + $0x180] sm:$0xff]
  %v62 = vld [vmem:[%s1 + $0x188] sm:$0xff]
  %v63 = vld [vmem:[%s1 + $0x190] sm:$0xff]
  %v64 = vld [vmem:[%s1 + $0x198] sm:$0xff]
  %v65 = vld [vmem:[%s1 + $0x1a0] sm:$0xff]
  %v66 = vld [vmem:[%s1 + $0x1a8] sm:$0xff]
  %v67 = vld [vmem:[%s1 + $0x1b0] sm:$0xff]
  %v68 = vld [vmem:[%s1 + $0x1b8] sm:$0xff]
  %v69 = vld [vmem:[%s1 + $0x1c0] sm:$0xff]
  %v70 = vld [vmem:[%s1 + $0x1c8] sm:$0xff]
  %v71 = vld [vmem:[%s1 + $0x1d0] sm:$0xff]
  %v72 = vld [vmem:[%s1 + $0x1d8] sm:$0xff]
  %v73 = vld [vmem:[%s1 + $0x1e0] sm:$0xff]
  %v74 = vld [vmem:[%s1 + $0x1e8] sm:$0xff]
  %v75 = vld [vmem:[%s1 + $0x1f0] sm:$0xff]
  %v76 = vld [vmem:[%s1 + $0x1f8] sm:$0xff]
  %v77 = vld [vmem:[%s1 + $0x200] sm:$0xff]
  %v78 = vld [vmem:[%s1 + $0x208] sm:$0xff]
  %v79 = vld [vmem:[%s1 + $0x210] sm:$0xff]
  %v80 = vld [vmem:[%s1 + $0x218] sm:$0xff]
  %v81 = vld [vmem:[%s1 + $0x220] sm:$0xff]
  %v82 = vld [vmem:[%s1 + $0x228] sm:$0xff]
  %v83 = vld [vmem:[%s1 + $0x230] sm:$0xff]
  %v84 = vld [vmem:[%s1 + $0x238] sm:$0xff]
  %v85 = vld [vmem:[%s1 + $0x240] sm:$0xff]
  %v86 = vld [vmem:[%s1 + $0x248] sm:$0xff]
  %v87 = vld [vmem:[%s1 + $0x250] sm:$0xff]
  %v88 = vld [vmem:[%s1 + $0x258] sm:$0xff]
  %v89 = vld [vmem:[%s1 + $0x260] sm:$0xff]
  %v90 = vld [vmem:[%s1 + $0x268] sm:$0xff]
  %v91 = vld [vmem:[%s1 + $0x270] sm:$0xff]
  %v92 = vld [vmem:[%s1 + $0x278] sm:$0xff]
  %v93 = vld [vmem:[%s1 + $0x280] sm:$0xff]
  %v94 = vld [vmem:[%s1 + $0x288] sm:$0xff]
  %v95 = vld [vmem:[%s1 + $0x290] sm:$0xff]
  %v96 = vld [vmem:[%s1 + $0x298] sm:$0xff]
  %v97 = vld [vmem:[%s1 + $0x2a0] sm:$0xff]
  %v98 = vld [vmem:[%s1 + $0x2a8] sm:$0xff]
  %v99 = vld [vmem:[%s1 + $0x2b0] sm:$0xff]
  %v100 = vld [vmem:[%s1 + $0x2b8] sm:$0xff]
  %v101 = vld [vmem:[%s1 + $0x2c0] sm:$0xff]
  %v102 = vld [vmem:[%s1 + $0x2c8] sm:$0xff]
  %v103 = vld [vmem:[%s1 + $0x2d0] sm:$0xff]
  %v104 = vld [vmem:[%s1 + $0x2d8] sm:$0xff]
  %v105 = vld [vmem:[%s1 + $0x2e0] sm:$0xff]
  %v106 = vld [vmem:[%s1 + $0x2e8] sm:$0xff]
  %v107 = vld [vmem:[%s1 + $0x2f0] sm:$0xff]
  %v108 = vld [vmem:[%s1 + $0x2f8] sm:$0xff]
  %v109 = vld [vmem:[%s1 + $0x300] sm:$0xff]
  %v110 = vld [vmem:[%s1 + $0x308] sm:$0xff]
  %v111 = vld [vmem:[%s1 + $0x310] sm:$0xff]
  %v112 = vld [vmem:[%s1 + $0x318] sm:$0xff]
  %v113 = vld [vmem:[%s1 + $0x320] sm:$0xff]
  %v114 = vld [vmem:[%s1 + $0x328] sm:$0xff]
  %v115 = vld [vmem:[%s1 + $0x330] sm:$0xff]
  %v116 = vld [vmem:[%s1 + $0x338] sm:$0xff]
  %v117 = vld [vmem:[%s1 + $0x340] sm:$0xff]
  %v118 = vld [vmem:[%s1 + $0x348] sm:$0xff]
  %v119 = vld [vmem:[%s1 + $0x350] sm:$0xff]
  %v120 = vld [vmem:[%s1 + $0x358] sm:$0xff]
  %v121 = vld [vmem:[%s1 + $0x360] sm:$0xff]
  %v122 = vld [vmem:[%s1 + $0x368] sm:$0xff]
  %v123 = vld [vmem:[%s1 + $0x370] sm:$0xff]
  %v124 = vld [vmem:[%s1 + $0x378] sm:$0xff]
  %v125 = vld [vmem:[%s1 + $0x380] sm:$0xff]
  %v126 = vld [vmem:[%s1 + $0x388] sm:$0xff]
  %v127 = vld [vmem:[%s1 + $0x390] sm:$0xff]
  %v128 = vld [vmem:[%s1 + $0x398] sm:$0xff]
  %v129 = vld [vmem:[%s1 + $0x3a0] sm:$0xff]
  %v130 = vld [vmem:[%s1 + $0x3a8] sm:$0xff]
  %v131 = vld [vmem:[%s1 + $0x3b0] sm:$0xff]
  %v132 = vld [vmem:[%s1 + $0x3b8] sm:$0xff]
  %v133 = vld [vmem:[%s1 + $0x3c0] sm:$0xff]
  %v134 = vld [vmem:[%s1 + $0x3c8] sm:$0xff]
  %v135 = vld [vmem:[%s1 + $0x3d0] sm:$0xff]
  %v136 = vld [vmem:[%s1 + $0x3d8] sm:$0xff]
  %v137 = vld [vmem:[%s1 + $0x3e0] sm:$0xff]
  %v138 = vld [vmem:[%s1 + $0x3e8] sm:$0xff]
  %v139 = vld [vmem:[%s1 + $0x3f0] sm:$0xff]
  %v140 = vld [vmem:[%s1 + $0x3f8] sm:$0xff]
  %v141 = vld [vmem:[%s1 + $0x400] sm:$0xff]
  %v142 = vld [vmem:[%s1 + $0x408] sm:$0xff]
  %v143 = vld [vmem:[%s1 + $0x410] sm:$0xff]
  %v144 = vld [vmem:[%s1 + $0x418] sm:$0xff]
  %v145 = vld [vmem:[%s1 + $0x420] sm:$0xff]
  %v146 = vld [vmem:[%s1 + $0x428] sm:$0xff]
  %v147 = vld [vmem:[%s1 + $0x430] sm:$0xff]
  %v148 = vld [vmem:[%s1 + $0x438] sm:$0xff]
  %v149 = vld [vmem:[%s1 + $0x440] sm:$0xff]
  %v150 = vld [vmem:[%s1 + $0x448] sm:$0xff]
  %v151 = vld [vmem:[%s1 + $0x450] sm:$0xff]
  %v152 = vld [vmem:[%s1 + $0x458] sm:$0xff]
  %v153 = vld [vmem:[%s1 + $0x460] sm:$0xff]
  %v154 = vld [vmem:[%s1 + $0x468] sm:$0xff]
  %v155 = vld [vmem:[%s1 + $0x470] sm:$0xff]
  %v156 = vld [vmem:[%s1 + $0x478] sm:$0xff]
  %v157 = vld [vmem:[%s1 + $0x480] sm:$0xff]
  %v158 = vld [vmem:[%s1 + $0x488] sm:$0xff]
  %v159 = vld [vmem:[%s1 + $0x490] sm:$0xff]
  %v160 = vld [vmem:[%s1 + $0x498] sm:$0xff]
  %v161 = vld [vmem:[%s1 + $0x4a0] sm:$0xff]
  %v162 = vld [vmem:[%s1 + $0x4a8] sm:$0xff]
  %v163 = vld [vmem:[%s1 + $0x4b0] sm:$0xff]
  %v164 = vld [vmem:[%s1 + $0x4b8] sm:$0xff]
  %v165 = vld [vmem:[%s1 + $0x4c0] sm:$0xff]
  %v166 = vld [vmem:[%s1 + $0x4c8] sm:$0xff]
  %v167 = vld [vmem:[%s1 + $0x4d0] sm:$0xff]
  %v168 = vld [vmem:[%s1 + $0x4d8] sm:$0xff]
  %v169 = vld [vmem:[%s1 + $0x4e0] sm:$0xff]
  %v170 = vld [vmem:[%s1 + $0x4e8] sm:$0xff]
  %v171 = vld [vmem:[%s1 + $0x4f0] sm:$0xff]
  %v172 = vld [vmem:[%s1 + $0x4f8] sm:$0xff]
  %v173 = vld [vmem:[%s1 + $0x500] sm:$0xff]
  %v174 = vld [vmem:[%s1 + $0x508] sm:$0xff]
  %v175 = vld [vmem:[%s1 + $0x510] sm:$0xff]
  %v176 = vld [vmem:[%s1 + $0x518] sm:$0xff]
  %v177 = vld [vmem:[%s1 + $0x520] sm:$0xff]
  %v178 = vld [vmem:[%s1 + $0x528] sm:$0xff]
  %v179 = vld [vmem:[%s1 + $0x530] sm:$0xff]
  %v180 = vld [vmem:[%s1 + $0x538] sm:$0xff]
  %v181 = vld [vmem:[%s1 + $0x540] sm:$0xff]
  %v182 = vld [vmem:[%s1 + $0x548] sm:$0xff]
  %v183 = vld [vmem:[%s1 + $0x550] sm:$0xff]
  %v184 = vld [vmem:[%s1 + $0x558] sm:$0xff]
  %v185 = vld [vmem:[%s1 + $0x560] sm:$0xff]
  %v186 = vld [vmem:[%s1 + $0x568] sm:$0xff]
  %v187 = vld [vmem:[%s1 + $0x570] sm:$0xff]
  %v188 = vld [vmem:[%s1 + $0x578] sm:$0xff]
  %v189 = vld [vmem:[%s1 + $0x580] sm:$0xff]
  %v190 = vld [vmem:[%s1 + $0x588] sm:$0xff]
  %v191 = vld [vmem:[%s1 + $0x590] sm:$0xff]
  %v192 = vld [vmem:[%s1 + $0x598] sm:$0xff]
  %v193 = vld [vmem:[%s1 + $0x5a0] sm:$0xff]
  %v194 = vld [vmem:[%s1 + $0x5a8] sm:$0xff]
  %v195 = vld [vmem:[%s1 + $0x5b0] sm:$0xff]
  %v196 = vld [vmem:[%s1 + $0x5b8] sm:$0xff]
  %v197 = vld [vmem:[%s1 + $0x5c0] sm:$0xff]
  %v198 = vld [vmem:[%s1 + $0x5c8] sm:$0xff]
  %v199 = vld [vmem:[%s1 + $0x5d0] sm:$0xff]
  %v200 = vld [vmem:[%s1 + $0x5d8] sm:$0xff]
  %v201 = vld [vmem:[%s1 + $0x5e0] sm:$0xff]
  %v202 = vld [vmem:[%s1 + $0x5e8] sm:$0xff]
  %v203 = vld [vmem:[%s1 + $0x5f0] sm:$0xff]
  %v204 = vld [vmem:[%s1 + $0x5f8] sm:$0xff]
  %v207 = vunpack.c.l.b16 %v11
  %v208 = vunpack.c.h.b16 %v11
  %v209 = vunpack.c.l.b16 %v12
  %v210 = vpack.c.b16 %v207, %v207
  %v211 = vpack.c.b16 %v208, %v208
  %v212 = vpack.c.b16 %v209, %v209
  %v408 = vunpack.c.l.b16 %v13
  %v409 = vunpack.c.h.b16 %v13
  %v410 = vunpack.c.l.b16 %v14
  %v411 = vunpack.c.h.b16 %v14
  %v412 = vunpack.c.l.b16 %v15
  %v413 = vunpack.c.h.b16 %v15
  %v414 = vunpack.c.l.b16 %v16
  %v415 = vunpack.c.h.b16 %v16
  %v416 = vunpack.c.l.b16 %v17
  %v417 = vunpack.c.h.b16 %v17
  %v418 = vunpack.c.l.b16 %v18
  %v419 = vunpack.c.h.b16 %v18
  %v420 = vunpack.c.l.b16 %v19
  %v421 = vunpack.c.h.b16 %v19
  %v422 = vunpack.c.l.b16 %v20
  %v423 = vunpack.c.h.b16 %v20
  %v424 = vunpack.c.l.b16 %v21
  %v425 = vunpack.c.h.b16 %v21
  %v426 = vunpack.c.l.b16 %v22
  %v427 = vunpack.c.h.b16 %v22
  %v428 = vunpack.c.l.b16 %v23
  %v429 = vunpack.c.h.b16 %v23
  %v430 = vunpack.c.l.b16 %v24
  %v431 = vunpack.c.h.b16 %v24
  %v432 = vunpack.c.l.b16 %v25
  %v433 = vunpack.c.h.b16 %v25
  %v434 = vunpack.c.l.b16 %v26
  %v435 = vunpack.c.h.b16 %v26
  %v436 = vunpack.c.l.b16 %v27
  %v437 = vunpack.c.h.b16 %v27
  %v438 = vunpack.c.l.b16 %v28
  %v439 = vunpack.c.h.b16 %v28
  %v440 = vunpack.c.l.b16 %v29
  %v441 = vunpack.c.h.b16 %v29
  %v442 = vunpack.c.l.b16 %v30
  %v443 = vunpack.c.h.b16 %v30
  %v444 = vunpack.c.l.b16 %v31
  %v445 = vunpack.c.h.b16 %v31
  %v446 = vunpack.c.l.b16 %v32
  %v447 = vunpack.c.h.b16 %v32
  %v448 = vunpack.c.l.b16 %v33
  %v449 = vunpack.c.h.b16 %v33
  %v450 = vunpack.c.l.b16 %v34
  %v451 = vunpack.c.h.b16 %v34
  %v452 = vunpack.c.l.b16 %v35
  %v453 = vunpack.c.h.b16 %v35
  %v454 = vunpack.c.l.b16 %v36
  %v455 = vunpack.c.h.b16 %v36
  %v456 = vunpack.c.l.b16 %v37
  %v457 = vunpack.c.h.b16 %v37
  %v458 = vunpack.c.l.b16 %v38
  %v459 = vunpack.c.h.b16 %v38
  %v460 = vunpack.c.l.b16 %v39
  %v461 = vunpack.c.h.b16 %v39
  %v462 = vunpack.c.l.b16 %v40
  %v463 = vunpack.c.h.b16 %v40
  %v464 = vunpack.c.l.b16 %v41
  %v465 = vunpack.c.h.b16 %v41
  %v466 = vunpack.c.l.b16 %v42
  %v467 = vunpack.c.h.b16 %v42
  %v468 = vunpack.c.l.b16 %v43
  %v469 = vunpack.c.h.b16 %v43
  %v470 = vunpack.c.l.b16 %v44
  %v471 = vunpack.c.h.b16 %v44
  %v472 = vunpack.c.l.b16 %v45
  %v473 = vunpack.c.h.b16 %v45
  %v474 = vunpack.c.l.b16 %v46
  %v475 = vunpack.c.h.b16 %v46
  %v476 = vunpack.c.l.b16 %v47
  %v477 = vunpack.c.h.b16 %v47
  %v478 = vunpack.c.l.b16 %v48
  %v479 = vunpack.c.h.b16 %v48
  %v480 = vunpack.c.l.b16 %v49
  %v481 = vunpack.c.h.b16 %v49
  %v482 = vunpack.c.l.b16 %v50
  %v483 = vunpack.c.h.b16 %v50
  %v484 = vunpack.c.l.b16 %v51
  %v485 = vunpack.c.h.b16 %v51
  %v486 = vunpack.c.l.b16 %v52
  %v487 = vunpack.c.h.b16 %v52
  %v488 = vunpack.c.l.b16 %v53
  %v489 = vunpack.c.h.b16 %v53
  %v490 = vunpack.c.l.b16 %v54
  %v491 = vunpack.c.h.b16 %v54
  %v492 = vunpack.c.l.b16 %v55
  %v493 = vunpack.c.h.b16 %v55
  %v494 = vunpack.c.l.b16 %v56
  %v495 = vunpack.c.h.b16 %v56
  %v496 = vunpack.c.l.b16 %v57
  %v497 = vunpack.c.h.b16 %v57
  %v498 = vunpack.c.l.b16 %v58
  %v499 = vunpack.c.h.b16 %v58
  %v500 = vunpack.c.l.b16 %v59
  %v501 = vunpack.c.h.b16 %v59
  %v502 = vunpack.c.l.b16 %v60
  %v503 = vunpack.c.h.b16 %v60
  %v504 = vunpack.c.l.b16 %v61
  %v505 = vunpack.c.h.b16 %v61
  %v506 = vunpack.c.l.b16 %v62
  %v507 = vunpack.c.h.b16 %v62
  %v508 = vunpack.c.l.b16 %v63
  %v509 = vunpack.c.h.b16 %v63
  %v510 = vunpack.c.l.b16 %v64
  %v511 = vunpack.c.h.b16 %v64
  %v512 = vunpack.c.l.b16 %v65
  %v513 = vunpack.c.h.b16 %v65
  %v514 = vunpack.c.l.b16 %v66
  %v515 = vunpack.c.h.b16 %v66
  %v516 = vunpack.c.l.b16 %v67
  %v517 = vunpack.c.h.b16 %v67
  %v518 = vunpack.c.l.b16 %v68
  %v519 = vunpack.c.h.b16 %v68
  %v520 = vunpack.c.l.b16 %v69
  %v521 = vunpack.c.h.b16 %v69
  %v522 = vunpack.c.l.b16 %v70
  %v523 = vunpack.c.h.b16 %v70
  %v524 = vunpack.c.l.b16 %v71
  %v525 = vunpack.c.h.b16 %v71
  %v526 = vunpack.c.l.b16 %v72
  %v527 = vunpack.c.h.b16 %v72
  %v528 = vunpack.c.l.b16 %v73
  %v529 = vunpack.c.h.b16 %v73
  %v530 = vunpack.c.l.b16 %v74
  %v531 = vunpack.c.h.b16 %v74
  %v532 = vunpack.c.l.b16 %v75
  %v533 = vunpack.c.h.b16 %v75
  %v534 = vunpack.c.l.b16 %v76
  %v535 = vunpack.c.h.b16 %v76
  %v536 = vunpack.c.l.b16 %v77
  %v537 = vunpack.c.h.b16 %v77
  %v538 = vunpack.c.l.b16 %v78
  %v539 = vunpack.c.h.b16 %v78
  %v540 = vunpack.c.l.b16 %v79
  %v541 = vunpack.c.h.b16 %v79
  %v542 = vunpack.c.l.b16 %v80
  %v543 = vunpack.c.h.b16 %v80
  %v544 = vunpack.c.l.b16 %v81
  %v545 = vunpack.c.h.b16 %v81
  %v546 = vunpack.c.l.b16 %v82
  %v547 = vunpack.c.h.b16 %v82
  %v548 = vunpack.c.l.b16 %v83
  %v549 = vunpack.c.h.b16 %v83
  %v550 = vunpack.c.l.b16 %v84
  %v551 = vunpack.c.h.b16 %v84
  %v552 = vunpack.c.l.b16 %v85
  %v553 = vunpack.c.h.b16 %v85
  %v554 = vunpack.c.l.b16 %v86
  %v555 = vunpack.c.h.b16 %v86
  %v556 = vunpack.c.l.b16 %v87
  %v557 = vunpack.c.h.b16 %v87
  %v558 = vunpack.c.l.b16 %v88
  %v559 = vunpack.c.h.b16 %v88
  %v560 = vunpack.c.l.b16 %v89
  %v561 = vunpack.c.h.b16 %v89
  %v562 = vunpack.c.l.b16 %v90
  %v563 = vunpack.c.h.b16 %v90
  %v564 = vunpack.c.l.b16 %v91
  %v565 = vunpack.c.h.b16 %v91
  %v566 = vunpack.c.l.b16 %v92
  %v567 = vunpack.c.h.b16 %v92
  %v568 = vunpack.c.l.b16 %v93
  %v569 = vunpack.c.h.b16 %v93
  %v570 = vunpack.c.l.b16 %v94
  %v571 = vunpack.c.h.b16 %v94
  %v572 = vunpack.c.l.b16 %v95
  %v573 = vunpack.c.h.b16 %v95
  %v574 = vunpack.c.l.b16 %v96
  %v575 = vunpack.c.h.b16 %v96
  %v576 = vunpack.c.l.b16 %v97
  %v577 = vunpack.c.h.b16 %v97
  %v578 = vunpack.c.l.b16 %v98
  %v579 = vunpack.c.h.b16 %v98
  %v580 = vunpack.c.l.b16 %v99
  %v581 = vunpack.c.h.b16 %v99
  %v582 = vunpack.c.l.b16 %v100
  %v583 = vunpack.c.h.b16 %v100
  %v584 = vunpack.c.l.b16 %v101
  %v585 = vunpack.c.h.b16 %v101
  %v586 = vunpack.c.l.b16 %v102
  %v587 = vunpack.c.h.b16 %v102
  %v588 = vunpack.c.l.b16 %v103
  %v589 = vunpack.c.h.b16 %v103
  %v590 = vunpack.c.l.b16 %v104
  %v591 = vunpack.c.h.b16 %v104
  %v592 = vunpack.c.l.b16 %v105
  %v593 = vunpack.c.h.b16 %v105
  %v594 = vunpack.c.l.b16 %v106
  %v595 = vunpack.c.h.b16 %v106
  %v596 = vunpack.c.l.b16 %v107
  %v597 = vunpack.c.h.b16 %v107
  %v598 = vunpack.c.l.b16 %v108
  %v599 = vunpack.c.h.b16 %v108
  %v600 = vunpack.c.l.b16 %v109
  %v601 = vunpack.c.h.b16 %v109
  %v602 = vunpack.c.l.b16 %v110
  %v603 = vunpack.c.h.b16 %v110
  %v604 = vunpack.c.l.b16 %v111
  %v605 = vunpack.c.h.b16 %v111
  %v606 = vunpack.c.l.b16 %v112
  %v607 = vunpack.c.h.b16 %v112
  %v608 = vunpack.c.l.b16 %v113
  %v609 = vunpack.c.h.b16 %v113
  %v610 = vunpack.c.l.b16 %v114
  %v611 = vunpack.c.h.b16 %v114
  %v612 = vunpack.c.l.b16 %v115
  %v613 = vunpack.c.h.b16 %v115
  %v614 = vunpack.c.l.b16 %v116
  %v615 = vunpack.c.h.b16 %v116
  %v616 = vunpack.c.l.b16 %v117
  %v617 = vunpack.c.h.b16 %v117
  %v618 = vunpack.c.l.b16 %v118
  %v619 = vunpack.c.h.b16 %v118
  %v620 = vunpack.c.l.b16 %v119
  %v621 = vunpack.c.h.b16 %v119
  %v622 = vunpack.c.l.b16 %v120
  %v623 = vunpack.c.h.b16 %v120
  %v624 = vunpack.c.l.b16 %v121
  %v625 = vunpack.c.h.b16 %v121
  %v626 = vunpack.c.l.b16 %v122
  %v627 = vunpack.c.h.b16 %v122
  %v628 = vunpack.c.l.b16 %v123
  %v629 = vunpack.c.h.b16 %v123
  %v630 = vunpack.c.l.b16 %v124
  %v631 = vunpack.c.h.b16 %v124
  %v632 = vunpack.c.l.b16 %v125
  %v633 = vunpack.c.h.b16 %v125
  %v634 = vunpack.c.l.b16 %v126
  %v635 = vunpack.c.h.b16 %v126
  %v636 = vunpack.c.l.b16 %v127
  %v637 = vunpack.c.h.b16 %v127
  %v638 = vunpack.c.l.b16 %v128
  %v639 = vunpack.c.h.b16 %v128
  %v640 = vunpack.c.l.b16 %v129
  %v641 = vunpack.c.h.b16 %v129
  %v642 = vunpack.c.l.b16 %v130
  %v643 = vunpack.c.h.b16 %v130
  %v644 = vunpack.c.l.b16 %v131
  %v645 = vunpack.c.h.b16 %v131
  %v646 = vunpack.c.l.b16 %v132
  %v647 = vunpack.c.h.b16 %v132
  %v648 = vunpack.c.l.b16 %v133
  %v649 = vunpack.c.h.b16 %v133
  %v650 = vunpack.c.l.b16 %v134
  %v651 = vunpack.c.h.b16 %v134
  %v652 = vunpack.c.l.b16 %v135
  %v653 = vunpack.c.h.b16 %v135
  %v654 = vunpack.c.l.b16 %v136
  %v655 = vunpack.c.h.b16 %v136
  %v656 = vunpack.c.l.b16 %v137
  %v657 = vunpack.c.h.b16 %v137
  %v658 = vunpack.c.l.b16 %v138
  %v659 = vunpack.c.h.b16 %v138
  %v660 = vunpack.c.l.b16 %v139
  %v661 = vunpack.c.h.b16 %v139
  %v662 = vunpack.c.l.b16 %v140
  %v663 = vunpack.c.h.b16 %v140
  %v664 = vunpack.c.l.b16 %v141
  %v665 = vunpack.c.h.b16 %v141
  %v666 = vunpack.c.l.b16 %v142
  %v667 = vunpack.c.h.b16 %v142
  %v668 = vunpack.c.l.b16 %v143
  %v669 = vunpack.c.h.b16 %v143
  %v670 = vunpack.c.l.b16 %v144
  %v671 = vunpack.c.h.b16 %v144
  %v672 = vunpack.c.l.b16 %v145
  %v673 = vunpack.c.h.b16 %v145
  %v674 = vunpack.c.l.b16 %v146
  %v675 = vunpack.c.h.b16 %v146
  %v676 = vunpack.c.l.b16 %v147
  %v677 = vunpack.c.h.b16 %v147
  %v678 = vunpack.c.l.b16 %v148
  %v679 = vunpack.c.h.b16 %v148
  %v680 = vunpack.c.l.b16 %v149
  %v681 = vunpack.c.h.b16 %v149
  %v682 = vunpack.c.l.b16 %v150
  %v683 = vunpack.c.h.b16 %v150
  %v684 = vunpack.c.l.b16 %v151
  %v685 = vunpack.c.h.b16 %v151
  %v686 = vunpack.c.l.b16 %v152
  %v687 = vunpack.c.h.b16 %v152
  %v688 = vunpack.c.l.b16 %v153
  %v689 = vunpack.c.h.b16 %v153
  %v690 = vunpack.c.l.b16 %v154
  %v691 = vunpack.c.h.b16 %v154
  %v692 = vunpack.c.l.b16 %v155
  %v693 = vunpack.c.h.b16 %v155
  %v694 = vunpack.c.l.b16 %v156
  %v695 = vunpack.c.h.b16 %v156
  %v696 = vunpack.c.l.b16 %v157
  %v697 = vunpack.c.h.b16 %v157
  %v698 = vunpack.c.l.b16 %v158
  %v699 = vunpack.c.h.b16 %v158
  %v700 = vunpack.c.l.b16 %v159
  %v701 = vunpack.c.h.b16 %v159
  %v702 = vunpack.c.l.b16 %v160
  %v703 = vunpack.c.h.b16 %v160
  %v704 = vunpack.c.l.b16 %v161
  %v705 = vunpack.c.h.b16 %v161
  %v706 = vunpack.c.l.b16 %v162
  %v707 = vunpack.c.h.b16 %v162
  %v708 = vunpack.c.l.b16 %v163
  %v709 = vunpack.c.h.b16 %v163
  %v710 = vunpack.c.l.b16 %v164
  %v711 = vunpack.c.h.b16 %v164
  %v712 = vunpack.c.l.b16 %v165
  %v713 = vunpack.c.h.b16 %v165
  %v714 = vunpack.c.l.b16 %v166
  %v715 = vunpack.c.h.b16 %v166
  %v716 = vunpack.c.l.b16 %v167
  %v717 = vunpack.c.h.b16 %v167
  %v718 = vunpack.c.l.b16 %v168
  %v719 = vunpack.c.h.b16 %v168
  %v720 = vunpack.c.l.b16 %v169
  %v721 = vunpack.c.h.b16 %v169
  %v722 = vunpack.c.l.b16 %v170
  %v723 = vunpack.c.h.b16 %v170
  %v724 = vunpack.c.l.b16 %v171
  %v725 = vunpack.c.h.b16 %v171
  %v726 = vunpack.c.l.b16 %v172
  %v727 = vunpack.c.h.b16 %v172
  %v728 = vunpack.c.l.b16 %v173
  %v729 = vunpack.c.h.b16 %v173
  %v730 = vunpack.c.l.b16 %v174
  %v731 = vunpack.c.h.b16 %v174
  %v732 = vunpack.c.l.b16 %v175
  %v733 = vunpack.c.h.b16 %v175
  %v734 = vunpack.c.l.b16 %v176
  %v735 = vunpack.c.h.b16 %v176
  %v736 = vunpack.c.l.b16 %v177
  %v737 = vunpack.c.h.b16 %v177
  %v738 = vunpack.c.l.b16 %v178
  %v739 = vunpack.c.h.b16 %v178
  %v740 = vunpack.c.l.b16 %v179
  %v741 = vunpack.c.h.b16 %v179
  %v742 = vunpack.c.l.b16 %v180
  %v743 = vunpack.c.h.b16 %v180
  %v744 = vunpack.c.l.b16 %v181
  %v745 = vunpack.c.h.b16 %v181
  %v746 = vunpack.c.l.b16 %v182
  %v747 = vunpack.c.h.b16 %v182
  %v748 = vunpack.c.l.b16 %v183
  %v749 = vunpack.c.h.b16 %v183
  %v750 = vunpack.c.l.b16 %v184
  %v751 = vunpack.c.h.b16 %v184
  %v752 = vunpack.c.l.b16 %v185
  %v753 = vunpack.c.h.b16 %v185
  %v754 = vunpack.c.l.b16 %v186
  %v755 = vunpack.c.h.b16 %v186
  %v756 = vunpack.c.l.b16 %v187
  %v757 = vunpack.c.h.b16 %v187
  %v758 = vunpack.c.l.b16 %v188
  %v759 = vunpack.c.h.b16 %v188
  %v760 = vunpack.c.l.b16 %v189
  %v761 = vunpack.c.h.b16 %v189
  %v762 = vunpack.c.l.b16 %v190
  %v763 = vunpack.c.h.b16 %v190
  %v764 = vunpack.c.l.b16 %v191
  %v765 = vunpack.c.h.b16 %v191
  %v766 = vunpack.c.l.b16 %v192
  %v767 = vunpack.c.h.b16 %v192
  %v768 = vunpack.c.l.b16 %v193
  %v769 = vunpack.c.h.b16 %v193
  %v770 = vunpack.c.l.b16 %v194
  %v771 = vunpack.c.h.b16 %v194
  %v772 = vunpack.c.l.b16 %v195
  %v773 = vunpack.c.h.b16 %v195
  %v774 = vunpack.c.l.b16 %v196
  %v775 = vunpack.c.h.b16 %v196
  %v776 = vunpack.c.l.b16 %v197
  %v777 = vunpack.c.h.b16 %v197
  %v778 = vunpack.c.l.b16 %v198
  %v779 = vunpack.c.h.b16 %v198
  %v780 = vunpack.c.l.b16 %v199
  %v781 = vunpack.c.h.b16 %v199
  %v782 = vunpack.c.l.b16 %v200
  %v783 = vunpack.c.h.b16 %v200
  %v784 = vunpack.c.l.b16 %v201
  %v785 = vunpack.c.h.b16 %v201
  %v786 = vunpack.c.l.b16 %v202
  %v787 = vunpack.c.h.b16 %v202
  %v788 = vunpack.c.l.b16 %v203
  %v789 = vunpack.c.h.b16 %v203
  %v790 = vunpack.c.l.b16 %v204
  %v791 = vunpack.c.h.b16 %v204
  %v792 = vpack.c.b16 %v416, %v408
  %v793 = vpack.c.b16 %v417, %v409
  %v794 = vpack.c.b16 %v418, %v410
  %v795 = vpack.c.b16 %v419, %v411
  %v796 = vpack.c.b16 %v420, %v412
  %v797 = vpack.c.b16 %v421, %v413
  %v798 = vpack.c.b16 %v422, %v414
  %v799 = vpack.c.b16 %v423, %v415
  %v800 = vpack.c.b16 %v432, %v424
  %v801 = vpack.c.b16 %v433, %v425
  %v802 = vpack.c.b16 %v434, %v426
  %v803 = vpack.c.b16 %v435, %v427
  %v804 = vpack.c.b16 %v436, %v428
  %v805 = vpack.c.b16 %v437, %v429
  %v806 = vpack.c.b16 %v438, %v430
  %v807 = vpack.c.b16 %v439, %v431
  %v808 = vpack.c.b16 %v448, %v440
  %v809 = vpack.c.b16 %v449, %v441
  %v810 = vpack.c.b16 %v450, %v442
  %v811 = vpack.c.b16 %v451, %v443
  %v812 = vpack.c.b16 %v452, %v444
  %v813 = vpack.c.b16 %v453, %v445
  %v814 = vpack.c.b16 %v454, %v446
  %v815 = vpack.c.b16 %v455, %v447
  %v816 = vpack.c.b16 %v464, %v456
  %v817 = vpack.c.b16 %v465, %v457
  %v818 = vpack.c.b16 %v466, %v458
  %v819 = vpack.c.b16 %v467, %v459
  %v820 = vpack.c.b16 %v468, %v460
  %v821 = vpack.c.b16 %v469, %v461
  %v822 = vpack.c.b16 %v470, %v462
  %v823 = vpack.c.b16 %v471, %v463
  %v824 = vpack.c.b16 %v480, %v472
  %v825 = vpack.c.b16 %v481, %v473
  %v826 = vpack.c.b16 %v482, %v474
  %v827 = vpack.c.b16 %v483, %v475
  %v828 = vpack.c.b16 %v484, %v476
  %v829 = vpack.c.b16 %v485, %v477
  %v830 = vpack.c.b16 %v486, %v478
  %v831 = vpack.c.b16 %v487, %v479
  %v832 = vpack.c.b16 %v496, %v488
  %v833 = vpack.c.b16 %v497, %v489
  %v834 = vpack.c.b16 %v498, %v490
  %v835 = vpack.c.b16 %v499, %v491
  %v836 = vpack.c.b16 %v500, %v492
  %v837 = vpack.c.b16 %v501, %v493
  %v838 = vpack.c.b16 %v502, %v494
  %v839 = vpack.c.b16 %v503, %v495
  %v840 = vpack.c.b16 %v512, %v504
  %v841 = vpack.c.b16 %v513, %v505
  %v842 = vpack.c.b16 %v514, %v506
  %v843 = vpack.c.b16 %v515, %v507
  %v844 = vpack.c.b16 %v516, %v508
  %v845 = vpack.c.b16 %v517, %v509
  %v846 = vpack.c.b16 %v518, %v510
  %v847 = vpack.c.b16 %v519, %v511
  %v848 = vpack.c.b16 %v528, %v520
  %v849 = vpack.c.b16 %v529, %v521
  %v850 = vpack.c.b16 %v530, %v522
  %v851 = vpack.c.b16 %v531, %v523
  %v852 = vpack.c.b16 %v532, %v524
  %v853 = vpack.c.b16 %v533, %v525
  %v854 = vpack.c.b16 %v534, %v526
  %v855 = vpack.c.b16 %v535, %v527
  %v856 = vpack.c.b16 %v544, %v536
  %v857 = vpack.c.b16 %v545, %v537
  %v858 = vpack.c.b16 %v546, %v538
  %v859 = vpack.c.b16 %v547, %v539
  %v860 = vpack.c.b16 %v548, %v540
  %v861 = vpack.c.b16 %v549, %v541
  %v862 = vpack.c.b16 %v550, %v542
  %v863 = vpack.c.b16 %v551, %v543
  %v864 = vpack.c.b16 %v560, %v552
  %v865 = vpack.c.b16 %v561, %v553
  %v866 = vpack.c.b16 %v562, %v554
  %v867 = vpack.c.b16 %v563, %v555
  %v868 = vpack.c.b16 %v564, %v556
  %v869 = vpack.c.b16 %v565, %v557
  %v870 = vpack.c.b16 %v566, %v558
  %v871 = vpack.c.b16 %v567, %v559
  %v872 = vpack.c.b16 %v576, %v568
  %v873 = vpack.c.b16 %v577, %v569
  %v874 = vpack.c.b16 %v578, %v570
  %v875 = vpack.c.b16 %v579, %v571
  %v876 = vpack.c.b16 %v580, %v572
  %v877 = vpack.c.b16 %v581, %v573
  %v878 = vpack.c.b16 %v582, %v574
  %v879 = vpack.c.b16 %v583, %v575
  %v880 = vpack.c.b16 %v592, %v584
  %v881 = vpack.c.b16 %v593, %v585
  %v882 = vpack.c.b16 %v594, %v586
  %v883 = vpack.c.b16 %v595, %v587
  %v884 = vpack.c.b16 %v596, %v588
  %v885 = vpack.c.b16 %v597, %v589
  %v886 = vpack.c.b16 %v598, %v590
  %v887 = vpack.c.b16 %v599, %v591
  %v888 = vpack.c.b16 %v608, %v600
  %v889 = vpack.c.b16 %v609, %v601
  %v890 = vpack.c.b16 %v610, %v602
  %v891 = vpack.c.b16 %v611, %v603
  %v892 = vpack.c.b16 %v612, %v604
  %v893 = vpack.c.b16 %v613, %v605
  %v894 = vpack.c.b16 %v614, %v606
  %v895 = vpack.c.b16 %v615, %v607
  %v896 = vpack.c.b16 %v624, %v616
  %v897 = vpack.c.b16 %v625, %v617
  %v898 = vpack.c.b16 %v626, %v618
  %v899 = vpack.c.b16 %v627, %v619
  %v900 = vpack.c.b16 %v628, %v620
  %v901 = vpack.c.b16 %v629, %v621
  %v902 = vpack.c.b16 %v630, %v622
  %v903 = vpack.c.b16 %v631, %v623
  %v904 = vpack.c.b16 %v640, %v632
  %v905 = vpack.c.b16 %v641, %v633
  %v906 = vpack.c.b16 %v642, %v634
  %v907 = vpack.c.b16 %v643, %v635
  %v908 = vpack.c.b16 %v644, %v636
  %v909 = vpack.c.b16 %v645, %v637
  %v910 = vpack.c.b16 %v646, %v638
  %v911 = vpack.c.b16 %v647, %v639
  %v912 = vpack.c.b16 %v656, %v648
  %v913 = vpack.c.b16 %v657, %v649
  %v914 = vpack.c.b16 %v658, %v650
  %v915 = vpack.c.b16 %v659, %v651
  %v916 = vpack.c.b16 %v660, %v652
  %v917 = vpack.c.b16 %v661, %v653
  %v918 = vpack.c.b16 %v662, %v654
  %v919 = vpack.c.b16 %v663, %v655
  %v920 = vpack.c.b16 %v672, %v664
  %v921 = vpack.c.b16 %v673, %v665
  %v922 = vpack.c.b16 %v674, %v666
  %v923 = vpack.c.b16 %v675, %v667
  %v924 = vpack.c.b16 %v676, %v668
  %v925 = vpack.c.b16 %v677, %v669
  %v926 = vpack.c.b16 %v678, %v670
  %v927 = vpack.c.b16 %v679, %v671
  %v928 = vpack.c.b16 %v688, %v680
  %v929 = vpack.c.b16 %v689, %v681
  %v930 = vpack.c.b16 %v690, %v682
  %v931 = vpack.c.b16 %v691, %v683
  %v932 = vpack.c.b16 %v692, %v684
  %v933 = vpack.c.b16 %v693, %v685
  %v934 = vpack.c.b16 %v694, %v686
  %v935 = vpack.c.b16 %v695, %v687
  %v936 = vpack.c.b16 %v704, %v696
  %v937 = vpack.c.b16 %v705, %v697
  %v938 = vpack.c.b16 %v706, %v698
  %v939 = vpack.c.b16 %v707, %v699
  %v940 = vpack.c.b16 %v708, %v700
  %v941 = vpack.c.b16 %v709, %v701
  %v942 = vpack.c.b16 %v710, %v702
  %v943 = vpack.c.b16 %v711, %v703
  %v944 = vpack.c.b16 %v720, %v712
  %v945 = vpack.c.b16 %v721, %v713
  %v946 = vpack.c.b16 %v722, %v714
  %v947 = vpack.c.b16 %v723, %v715
  %v948 = vpack.c.b16 %v724, %v716
  %v949 = vpack.c.b16 %v725, %v717
  %v950 = vpack.c.b16 %v726, %v718
  %v951 = vpack.c.b16 %v727, %v719
  %v952 = vpack.c.b16 %v736, %v728
  %v953 = vpack.c.b16 %v737, %v729
  %v954 = vpack.c.b16 %v738, %v730
  %v955 = vpack.c.b16 %v739, %v731
  %v956 = vpack.c.b16 %v740, %v732
  %v957 = vpack.c.b16 %v741, %v733
  %v958 = vpack.c.b16 %v742, %v734
  %v959 = vpack.c.b16 %v743, %v735
  %v960 = vpack.c.b16 %v752, %v744
  %v961 = vpack.c.b16 %v753, %v745
  %v962 = vpack.c.b16 %v754, %v746
  %v963 = vpack.c.b16 %v755, %v747
  %v964 = vpack.c.b16 %v756, %v748
  %v965 = vpack.c.b16 %v757, %v749
  %v966 = vpack.c.b16 %v758, %v750
  %v967 = vpack.c.b16 %v759, %v751
  %v968 = vpack.c.b16 %v768, %v760
  %v969 = vpack.c.b16 %v769, %v761
  %v970 = vpack.c.b16 %v770, %v762
  %v971 = vpack.c.b16 %v771, %v763
  %v972 = vpack.c.b16 %v772, %v764
  %v973 = vpack.c.b16 %v773, %v765
  %v974 = vpack.c.b16 %v774, %v766
  %v975 = vpack.c.b16 %v775, %v767
  %v976 = vpack.c.b16 %v784, %v776
  %v977 = vpack.c.b16 %v785, %v777
  %v978 = vpack.c.b16 %v786, %v778
  %v979 = vpack.c.b16 %v787, %v779
  %v980 = vpack.c.b16 %v788, %v780
  %v981 = vpack.c.b16 %v789, %v781
  %v982 = vpack.c.b16 %v790, %v782
  %v983 = vpack.c.b16 %v791, %v783
  %1176 = vmatpush.bf16.msra.mxu0 %v848
  %1177 = vmatpush.bf16.msra.mxu0 %v840
  %1178 = vmatpush.bf16.msra.mxu0 %v832
  %1179 = vmatpush.bf16.msra.mxu0 %v824
  %1180 = vmatpush.bf16.msra.mxu0 %v816
  %1181 = vmatpush.bf16.msra.mxu0 %v808
  %1182 = vmatpush.bf16.msra.mxu0 %v800
  %1183 = vmatpush.bf16.msra.mxu0 %v792
  %1184 = vmatmul.bf16.gmra.mxu0 %v210
  %v1185 = vpop.f32.mrf.mxu0
  %v1186 = vadd.f32 0.0, %v1185
  %v1187 = vpop.f32.mrf.mxu0
  %1188 = vdwg.mxu0
  %1189 = vmatpush.bf16.msra.mxu0 %v912
  %1190 = vmatpush.bf16.msra.mxu0 %v904
  %1191 = vmatpush.bf16.msra.mxu0 %v896
  %1192 = vmatpush.bf16.msra.mxu0 %v888
  %1193 = vmatpush.bf16.msra.mxu0 %v880
  %1194 = vmatpush.bf16.msra.mxu0 %v872
  %1195 = vmatpush.bf16.msra.mxu0 %v864
  %1196 = vmatpush.bf16.msra.mxu0 %v856
  %1197 = vmatmul.bf16.gmra.mxu0 %v211
  %v1198 = vpop.f32.mrf.mxu0
  %v1199 = vadd.f32 %v1186, %v1198
  %v1200 = vpop.f32.mrf.mxu0
  %1201 = vdwg.mxu0
  %1202 = vmatpush.bf16.msra.mxu0 %v976
  %1203 = vmatpush.bf16.msra.mxu0 %v968
  %1204 = vmatpush.bf16.msra.mxu0 %v960
  %1205 = vmatpush.bf16.msra.mxu0 %v952
  %1206 = vmatpush.bf16.msra.mxu0 %v944
  %1207 = vmatpush.bf16.msra.mxu0 %v936
  %1208 = vmatpush.bf16.msra.mxu0 %v928
  %1209 = vmatpush.bf16.msra.mxu0 %v920
  %1210 = vmatmul.bf16.gmra.mxu0 %v212
  %v1211 = vpop.f32.mrf.mxu0
  %v1212 = vadd.f32 %v1199, %v1211
  %v1213 = vpop.f32.mrf.mxu0
  %1214 = vdwg.mxu0
  %1215 = vmatpush.bf16.msra.mxu0 %v849
  %1216 = vmatpush.bf16.msra.mxu0 %v841
  %1217 = vmatpush.bf16.msra.mxu0 %v833
  %1218 = vmatpush.bf16.msra.mxu0 %v825
  %1219 = vmatpush.bf16.msra.mxu0 %v817
  %1220 = vmatpush.bf16.msra.mxu0 %v809
  %1221 = vmatpush.bf16.msra.mxu0 %v801
  %1222 = vmatpush.bf16.msra.mxu0 %v793
  %1223 = vmatmul.bf16.gmra.mxu0 %v210
  %v1224 = vpop.f32.mrf.mxu0
  %v1225 = vadd.f32 0.0, %v1224
  %v1226 = vpop.f32.mrf.mxu0
  %1227 = vdwg.mxu0
  %1228 = vmatpush.bf16.msra.mxu0 %v913
  %1229 = vmatpush.bf16.msra.mxu0 %v905
  %1230 = vmatpush.bf16.msra.mxu0 %v897
  %1231 = vmatpush.bf16.msra.mxu0 %v889
  %1232 = vmatpush.bf16.msra.mxu0 %v881
  %1233 = vmatpush.bf16.msra.mxu0 %v873
  %1234 = vmatpush.bf16.msra.mxu0 %v865
  %1235 = vmatpush.bf16.msra.mxu0 %v857
  %1236 = vmatmul.bf16.gmra.mxu0 %v211
  %v1237 = vpop.f32.mrf.mxu0
  %v1238 = vadd.f32 %v1225, %v1237
  %v1239 = vpop.f32.mrf.mxu0
  %1240 = vdwg.mxu0
  %1241 = vmatpush.bf16.msra.mxu0 %v977
  %1242 = vmatpush.bf16.msra.mxu0 %v969
  %1243 = vmatpush.bf16.msra.mxu0 %v961
  %1244 = vmatpush.bf16.msra.mxu0 %v953
  %1245 = vmatpush.bf16.msra.mxu0 %v945
  %1246 = vmatpush.bf16.msra.mxu0 %v937
  %1247 = vmatpush.bf16.msra.mxu0 %v929
  %1248 = vmatpush.bf16.msra.mxu0 %v921
  %1249 = vmatmul.bf16.gmra.mxu0 %v212
  %v1250 = vpop.f32.mrf.mxu0
  %v1251 = vadd.f32 %v1238, %v1250
  %v1252 = vpop.f32.mrf.mxu0
  %1253 = vdwg.mxu0
  %1254 = vmatpush.bf16.msra.mxu0 %v850
  %1255 = vmatpush.bf16.msra.mxu0 %v842
  %1256 = vmatpush.bf16.msra.mxu0 %v834
  %1257 = vmatpush.bf16.msra.mxu0 %v826
  %1258 = vmatpush.bf16.msra.mxu0 %v818
  %1259 = vmatpush.bf16.msra.mxu0 %v810
  %1260 = vmatpush.bf16.msra.mxu0 %v802
  %1261 = vmatpush.bf16.msra.mxu0 %v794
  %1262 = vmatmul.bf16.gmra.mxu0 %v210
  %v1263 = vpop.f32.mrf.mxu0
  %v1264 = vadd.f32 0.0, %v1263
  %v1265 = vpop.f32.mrf.mxu0
  %1266 = vdwg.mxu0
  %1267 = vmatpush.bf16.msra.mxu0 %v914
  %1268 = vmatpush.bf16.msra.mxu0 %v906
  %1269 = vmatpush.bf16.msra.mxu0 %v898
  %1270 = vmatpush.bf16.msra.mxu0 %v890
  %1271 = vmatpush.bf16.msra.mxu0 %v882
  %1272 = vmatpush.bf16.msra.mxu0 %v874
  %1273 = vmatpush.bf16.msra.mxu0 %v866
  %1274 = vmatpush.bf16.msra.mxu0 %v858
  %1275 = vmatmul.bf16.gmra.mxu0 %v211
  %v1276 = vpop.f32.mrf.mxu0
  %v1277 = vadd.f32 %v1264, %v1276
  %v1278 = vpop.f32.mrf.mxu0
  %1279 = vdwg.mxu0
  %1280 = vmatpush.bf16.msra.mxu0 %v978
  %1281 = vmatpush.bf16.msra.mxu0 %v970
  %1282 = vmatpush.bf16.msra.mxu0 %v962
  %1283 = vmatpush.bf16.msra.mxu0 %v954
  %1284 = vmatpush.bf16.msra.mxu0 %v946
  %1285 = vmatpush.bf16.msra.mxu0 %v938
  %1286 = vmatpush.bf16.msra.mxu0 %v930
  %1287 = vmatpush.bf16.msra.mxu0 %v922
  %1288 = vmatmul.bf16.gmra.mxu0 %v212
  %v1289 = vpop.f32.mrf.mxu0
  %v1290 = vadd.f32 %v1277, %v1289
  %v1291 = vpop.f32.mrf.mxu0
  %1292 = vdwg.mxu0
  %1293 = vmatpush.bf16.msra.mxu0 %v851
  %1294 = vmatpush.bf16.msra.mxu0 %v843
  %1295 = vmatpush.bf16.msra.mxu0 %v835
  %1296 = vmatpush.bf16.msra.mxu0 %v827
  %1297 = vmatpush.bf16.msra.mxu0 %v819
  %1298 = vmatpush.bf16.msra.mxu0 %v811
  %1299 = vmatpush.bf16.msra.mxu0 %v803
  %1300 = vmatpush.bf16.msra.mxu0 %v795
  %1301 = vmatmul.bf16.gmra.mxu0 %v210
  %v1302 = vpop.f32.mrf.mxu0
  %v1303 = vadd.f32 0.0, %v1302
  %v1304 = vpop.f32.mrf.mxu0
  %1305 = vdwg.mxu0
  %1306 = vmatpush.bf16.msra.mxu0 %v915
  %1307 = vmatpush.bf16.msra.mxu0 %v907
  %1308 = vmatpush.bf16.msra.mxu0 %v899
  %1309 = vmatpush.bf16.msra.mxu0 %v891
  %1310 = vmatpush.bf16.msra.mxu0 %v883
  %1311 = vmatpush.bf16.msra.mxu0 %v875
  %1312 = vmatpush.bf16.msra.mxu0 %v867
  %1313 = vmatpush.bf16.msra.mxu0 %v859
  %1314 = vmatmul.bf16.gmra.mxu0 %v211
  %v1315 = vpop.f32.mrf.mxu0
  %v1316 = vadd.f32 %v1303, %v1315
  %v1317 = vpop.f32.mrf.mxu0
  %1318 = vdwg.mxu0
  %1319 = vmatpush.bf16.msra.mxu0 %v979
  %1320 = vmatpush.bf16.msra.mxu0 %v971
  %1321 = vmatpush.bf16.msra.mxu0 %v963
  %1322 = vmatpush.bf16.msra.mxu0 %v955
  %1323 = vmatpush.bf16.msra.mxu0 %v947
  %1324 = vmatpush.bf16.msra.mxu0 %v939
  %1325 = vmatpush.bf16.msra.mxu0 %v931
  %1326 = vmatpush.bf16.msra.mxu0 %v923
  %1327 = vmatmul.bf16.gmra.mxu0 %v212
  %v1328 = vpop.f32.mrf.mxu0
  %v1329 = vadd.f32 %v1316, %v1328
  %v1330 = vpop.f32.mrf.mxu0
  %1331 = vdwg.mxu0
  %1332 = vmatpush.bf16.msra.mxu0 %v852
  %1333 = vmatpush.bf16.msra.mxu0 %v844
  %1334 = vmatpush.bf16.msra.mxu0 %v836
  %1335 = vmatpush.bf16.msra.mxu0 %v828
  %1336 = vmatpush.bf16.msra.mxu0 %v820
  %1337 = vmatpush.bf16.msra.mxu0 %v812
  %1338 = vmatpush.bf16.msra.mxu0 %v804
  %1339 = vmatpush.bf16.msra.mxu0 %v796
  %1340 = vmatmul.bf16.gmra.mxu0 %v210
  %v1341 = vpop.f32.mrf.mxu0
  %v1342 = vadd.f32 0.0, %v1341
  %v1343 = vpop.f32.mrf.mxu0
  %1344 = vdwg.mxu0
  %1345 = vmatpush.bf16.msra.mxu0 %v916
  %1346 = vmatpush.bf16.msra.mxu0 %v908
  %1347 = vmatpush.bf16.msra.mxu0 %v900
  %1348 = vmatpush.bf16.msra.mxu0 %v892
  %1349 = vmatpush.bf16.msra.mxu0 %v884
  %1350 = vmatpush.bf16.msra.mxu0 %v876
  %1351 = vmatpush.bf16.msra.mxu0 %v868
  %1352 = vmatpush.bf16.msra.mxu0 %v860
  %1353 = vmatmul.bf16.gmra.mxu0 %v211
  %v1354 = vpop.f32.mrf.mxu0
  %v1355 = vadd.f32 %v1342, %v1354
  %v1356 = vpop.f32.mrf.mxu0
  %1357 = vdwg.mxu0
  %1358 = vmatpush.bf16.msra.mxu0 %v980
  %1359 = vmatpush.bf16.msra.mxu0 %v972
  %1360 = vmatpush.bf16.msra.mxu0 %v964
  %1361 = vmatpush.bf16.msra.mxu0 %v956
  %1362 = vmatpush.bf16.msra.mxu0 %v948
  %1363 = vmatpush.bf16.msra.mxu0 %v940
  %1364 = vmatpush.bf16.msra.mxu0 %v932
  %1365 = vmatpush.bf16.msra.mxu0 %v924
  %1366 = vmatmul.bf16.gmra.mxu0 %v212
  %v1367 = vpop.f32.mrf.mxu0
  %v1368 = vadd.f32 %v1355, %v1367
  %v1369 = vpop.f32.mrf.mxu0
  %1370 = vdwg.mxu0
  %1371 = vmatpush.bf16.msra.mxu0 %v853
  %1372 = vmatpush.bf16.msra.mxu0 %v845
  %1373 = vmatpush.bf16.msra.mxu0 %v837
  %1374 = vmatpush.bf16.msra.mxu0 %v829
  %1375 = vmatpush.bf16.msra.mxu0 %v821
  %1376 = vmatpush.bf16.msra.mxu0 %v813
  %1377 = vmatpush.bf16.msra.mxu0 %v805
  %1378 = vmatpush.bf16.msra.mxu0 %v797
  %1379 = vmatmul.bf16.gmra.mxu0 %v210
  %v1380 = vpop.f32.mrf.mxu0
  %v1381 = vadd.f32 0.0, %v1380
  %v1382 = vpop.f32.mrf.mxu0
  %1383 = vdwg.mxu0
  %1384 = vmatpush.bf16.msra.mxu0 %v917
  %1385 = vmatpush.bf16.msra.mxu0 %v909
  %1386 = vmatpush.bf16.msra.mxu0 %v901
  %1387 = vmatpush.bf16.msra.mxu0 %v893
  %1388 = vmatpush.bf16.msra.mxu0 %v885
  %1389 = vmatpush.bf16.msra.mxu0 %v877
  %1390 = vmatpush.bf16.msra.mxu0 %v869
  %1391 = vmatpush.bf16.msra.mxu0 %v861
  %1392 = vmatmul.bf16.gmra.mxu0 %v211
  %v1393 = vpop.f32.mrf.mxu0
  %v1394 = vadd.f32 %v1381, %v1393
  %v1395 = vpop.f32.mrf.mxu0
  %1396 = vdwg.mxu0
  %1397 = vmatpush.bf16.msra.mxu0 %v981
  %1398 = vmatpush.bf16.msra.mxu0 %v973
  %1399 = vmatpush.bf16.msra.mxu0 %v965
  %1400 = vmatpush.bf16.msra.mxu0 %v957
  %1401 = vmatpush.bf16.msra.mxu0 %v949
  %1402 = vmatpush.bf16.msra.mxu0 %v941
  %1403 = vmatpush.bf16.msra.mxu0 %v933
  %1404 = vmatpush.bf16.msra.mxu0 %v925
  %1405 = vmatmul.bf16.gmra.mxu0 %v212
  %v1406 = vpop.f32.mrf.mxu0
  %v1407 = vadd.f32 %v1394, %v1406
  %v1408 = vpop.f32.mrf.mxu0
  %1409 = vdwg.mxu0
  %1410 = vmatpush.bf16.msra.mxu0 %v854
  %1411 = vmatpush.bf16.msra.mxu0 %v846
  %1412 = vmatpush.bf16.msra.mxu0 %v838
  %1413 = vmatpush.bf16.msra.mxu0 %v830
  %1414 = vmatpush.bf16.msra.mxu0 %v822
  %1415 = vmatpush.bf16.msra.mxu0 %v814
  %1416 = vmatpush.bf16.msra.mxu0 %v806
  %1417 = vmatpush.bf16.msra.mxu0 %v798
  %1418 = vmatmul.bf16.gmra.mxu0 %v210
  %v1419 = vpop.f32.mrf.mxu0
  %v1420 = vadd.f32 0.0, %v1419
  %v1421 = vpop.f32.mrf.mxu0
  %1422 = vdwg.mxu0
  %1423 = vmatpush.bf16.msra.mxu0 %v918
  %1424 = vmatpush.bf16.msra.mxu0 %v910
  %1425 = vmatpush.bf16.msra.mxu0 %v902
  %1426 = vmatpush.bf16.msra.mxu0 %v894
  %1427 = vmatpush.bf16.msra.mxu0 %v886
  %1428 = vmatpush.bf16.msra.mxu0 %v878
  %1429 = vmatpush.bf16.msra.mxu0 %v870
  %1430 = vmatpush.bf16.msra.mxu0 %v862
  %1431 = vmatmul.bf16.gmra.mxu0 %v211
  %v1432 = vpop.f32.mrf.mxu0
  %v1433 = vadd.f32 %v1420, %v1432
  %v1434 = vpop.f32.mrf.mxu0
  %1435 = vdwg.mxu0
  %1436 = vmatpush.bf16.msra.mxu0 %v982
  %1437 = vmatpush.bf16.msra.mxu0 %v974
  %1438 = vmatpush.bf16.msra.mxu0 %v966
  %1439 = vmatpush.bf16.msra.mxu0 %v958
  %1440 = vmatpush.bf16.msra.mxu0 %v950
  %1441 = vmatpush.bf16.msra.mxu0 %v942
  %1442 = vmatpush.bf16.msra.mxu0 %v934
  %1443 = vmatpush.bf16.msra.mxu0 %v926
  %1444 = vmatmul.bf16.gmra.mxu0 %v212
  %v1445 = vpop.f32.mrf.mxu0
  %v1446 = vadd.f32 %v1433, %v1445
  %v1447 = vpop.f32.mrf.mxu0
  %1448 = vdwg.mxu0
  %1449 = vmatpush.bf16.msra.mxu0 %v855
  %1450 = vmatpush.bf16.msra.mxu0 %v847
  %1451 = vmatpush.bf16.msra.mxu0 %v839
  %1452 = vmatpush.bf16.msra.mxu0 %v831
  %1453 = vmatpush.bf16.msra.mxu0 %v823
  %1454 = vmatpush.bf16.msra.mxu0 %v815
  %1455 = vmatpush.bf16.msra.mxu0 %v807
  %1456 = vmatpush.bf16.msra.mxu0 %v799
  %1457 = vmatmul.bf16.gmra.mxu0 %v210
  %v1458 = vpop.f32.mrf.mxu0
  %v1459 = vadd.f32 0.0, %v1458
  %v1460 = vpop.f32.mrf.mxu0
  %1461 = vdwg.mxu0
  %1462 = vmatpush.bf16.msra.mxu0 %v919
  %1463 = vmatpush.bf16.msra.mxu0 %v911
  %1464 = vmatpush.bf16.msra.mxu0 %v903
  %1465 = vmatpush.bf16.msra.mxu0 %v895
  %1466 = vmatpush.bf16.msra.mxu0 %v887
  %1467 = vmatpush.bf16.msra.mxu0 %v879
  %1468 = vmatpush.bf16.msra.mxu0 %v871
  %1469 = vmatpush.bf16.msra.mxu0 %v863
  %1470 = vmatmul.bf16.gmra.mxu0 %v211
  %v1471 = vpop.f32.mrf.mxu0
  %v1472 = vadd.f32 %v1459, %v1471
  %v1473 = vpop.f32.mrf.mxu0
  %1474 = vdwg.mxu0
  %1475 = vmatpush.bf16.msra.mxu0 %v983
  %1476 = vmatpush.bf16.msra.mxu0 %v975
  %1477 = vmatpush.bf16.msra.mxu0 %v967
  %1478 = vmatpush.bf16.msra.mxu0 %v959
  %1479 = vmatpush.bf16.msra.mxu0 %v951
  %1480 = vmatpush.bf16.msra.mxu0 %v943
  %1481 = vmatpush.bf16.msra.mxu0 %v935
  %1482 = vmatpush.bf16.msra.mxu0 %v927
  %1483 = vmatmul.bf16.gmra.mxu0 %v212
  %v1484 = vpop.f32.mrf.mxu0
  %v1485 = vadd.f32 %v1472, %v1484
  %v1486 = vpop.f32.mrf.mxu0
  %1487 = vdwg.mxu0
  %1488 = vst [vmem:[%s2] sm:$0xff] %v1212
  %1489 = vst [vmem:[%s2 + $0x8] sm:$0xff] %v1251
  %1490 = vst [vmem:[%s2 + $0x10] sm:$0xff] %v1290
  %1491 = vst [vmem:[%s2 + $0x18] sm:$0xff] %v1329
  %1492 = vst [vmem:[%s2 + $0x20] sm:$0xff] %v1368
  %1493 = vst [vmem:[%s2 + $0x28] sm:$0xff] %v1407
  %1494 = vst [vmem:[%s2 + $0x30] sm:$0xff] %v1446
  %1495 = vst [vmem:[%s2 + $0x38] sm:$0xff] %v1485
  // Predicated region
  $region10: #{fbnetv2_basic_search_block_forward.1} parent=0 // pred_check
    _
  $region11: #{fbnetv2_basic_search_block_forward.1} parent=0 // pred_check_branch
    %1497 = sbr.rel (0) target = $region13
  $region12: #{fbnetv2_basic_search_block_forward.1} parent=0 // pred_region
    _
  $region13: #{fbnetv2_basic_search_block_forward.1} parent=0 // pred_fallthru
    _
  // Predicated region
  $region14: #{fbnetv2_basic_search_block_forward.1} parent=0 // pred_check
    _
  $region15: #{fbnetv2_basic_search_block_forward.1} parent=0 // pred_check_branch
    %1499 = sbr.rel (0) target = $region17
  $region16: #{fbnetv2_basic_search_block_forward.1} parent=0 // pred_region
    _
  $region17: #{fbnetv2_basic_search_block_forward.1} parent=0 // pred_fallthru
    _

</llo_original>
